<compile_context>
chip_gen: v6e
topology: v6e:2x2x1
jax: 0.10.0
libtpu: 0.0.40
codegen_flags: <defaults>
</compile_context>

<pallas_src>
import jax
import jax.numpy as jnp
from jax.experimental import pallas as pl
from jax.experimental.pallas import tpu as pltpu

LANE = 128   # lane width: feature dim padded to this (lane-dense output stores)
TN = 128     # destination-node tile (sublane-aligned, 'parallel' grid axis)
TE = 256     # edge tile (reduction axis, last grid axis)


def a_mean_kernel(x_ref, wt_ref, b_ref, a_ref, deg_ref, res_ref, out_ref, acc_ref):
    j = pl.program_id(1)

    @pl.when(j == 0)
    def _():
        acc_ref[...] = jnp.zeros_like(acc_ref)

    # Per-edge message: relu(x @ W^T + b). W arrives pre-transposed, so the MXU
    # contracts directly on its leading dim (no in-kernel transpose).
    msg = jnp.dot(x_ref[...], wt_ref[...], preferred_element_type=jnp.float32)
    msg = jnp.maximum(msg + b_ref[...], 0.0)

    # Segment-sum of messages via the 0/1 bf16 aggregation tile (bf16 MXU path,
    # f32 accumulation in VMEM scratch).
    acc_ref[...] += jnp.dot(a_ref[...], msg.astype(jnp.bfloat16),
                            preferred_element_type=jnp.float32)

    @pl.when(j == pl.num_programs(1) - 1)
    def _():
        # mean = sum * (1/deg); deg pre-clamped to >=1 so deg-0 nodes give 0
        inv_deg = pl.reciprocal(deg_ref[...], approx=True)
        out_ref[...] = (acc_ref[...] * inv_deg + res_ref[...]).astype(out_ref.dtype)


def _round_up(x, m):
    return (x + m - 1) // m * m


def a_mean_forward(src_emb, dst_idx, num_dst, W, b):
    """src_emb: (E + N_dst, D); dst_idx: (E,) int32 destination node per edge."""
    E = dst_idx.shape[0]
    D = src_emb.shape[1]
    N = num_dst

    Dp = _round_up(D, LANE)
    Ep = _round_up(E, TE)
    Np = _round_up(N, TN)

    # ---- glue (plain JAX): slicing, lane/tile padding, graph -> matrices ----
    x_e = src_emb[:E, :]                  # edge-source features
    res = src_emb[E:, :]                  # dst-node residual features

    x_p = jnp.zeros((Ep, Dp), jnp.float32).at[:E, :D].set(x_e)
    res_p = jnp.zeros((Np, Dp), jnp.float32).at[:N, :D].set(res)
    wt_p = jnp.zeros((Dp, Dp), jnp.float32).at[:D, :D].set(W.T)   # pre-transposed
    b_p = jnp.zeros((1, Dp), jnp.float32).at[0, :D].set(b)

    # Unnormalized 0/1 aggregation matrix in bf16 (exact values; padded edges
    # map to no destination, padded destinations receive no edges).
    dst_p = jnp.full((Ep,), -1, jnp.int32).at[:E].set(dst_idx.astype(jnp.int32))
    A = (dst_p[None, :] == jnp.arange(Np, dtype=jnp.int32)[:, None]).astype(jnp.bfloat16)

    # In-degree per destination node, clamped to 1 (DGL mean: deg-0 nodes -> 0).
    deg = jnp.maximum(A.astype(jnp.float32).sum(axis=1), 1.0).reshape(Np, 1)

    grid = (Np // TN, Ep // TE)
    out_p = pl.pallas_call(
        a_mean_kernel,
        out_shape=jax.ShapeDtypeStruct((Np, Dp), src_emb.dtype),
        grid_spec=pltpu.PrefetchScalarGridSpec(
            num_scalar_prefetch=0,
            grid=grid,
            in_specs=[
                pl.BlockSpec((TE, Dp), lambda i, j: (j, 0)),   # edge features
                pl.BlockSpec((Dp, Dp), lambda i, j: (0, 0)),   # W^T (resident)
                pl.BlockSpec((1, Dp), lambda i, j: (0, 0)),    # bias   (resident)
                pl.BlockSpec((TN, TE), lambda i, j: (i, j)),   # 0/1 aggregation tile
                pl.BlockSpec((TN, 1), lambda i, j: (i, 0)),    # in-degree
                pl.BlockSpec((TN, Dp), lambda i, j: (i, 0)),   # residual
            ],
            out_specs=pl.BlockSpec((TN, Dp), lambda i, j: (i, 0)),
            scratch_shapes=[pltpu.VMEM((TN, Dp), jnp.float32)],
        ),
        compiler_params=pltpu.CompilerParams(
            dimension_semantics=("parallel", "arbitrary")),
    )(x_p, wt_p, b_p, A, deg, res_p)

    return out_p[:N, :D]


def reference_forward(src_emb, dst_idx, num_dst, W, b):
    E = dst_idx.shape[0]
    msg = jnp.maximum(src_emb[:E] @ W.T + b, 0.0)
    onehot = (dst_idx[None, :] == jnp.arange(num_dst)[:, None]).astype(jnp.float32)
    deg = jnp.maximum(onehot.sum(axis=1, keepdims=True), 1.0)
    h = (onehot / deg) @ msg
    return h + src_emb[E:]


if __name__ == "__main__":
    key = jax.random.PRNGKey(0)
    k_emb, k_w, k_b, k_d = jax.random.split(key, 4)

    feature_dim = 32      # args['feature_dim']
    num_edges = 512       # block.num_edges()
    num_dst = 256         # block.num_dst_nodes()

    # src_emb carries edge-source features (first E rows) followed by dst-node
    # features (next N rows), matching the module's slicing convention.
    src_emb = jax.random.normal(k_emb, (num_edges + num_dst, feature_dim),
                                dtype=jnp.float32)

    # Deterministic nn.Linear(feature_dim, feature_dim) init (PyTorch-style uniform).
    bound = 1.0 / (feature_dim ** 0.5)
    W = jax.random.uniform(k_w, (feature_dim, feature_dim),
                           minval=-bound, maxval=bound, dtype=jnp.float32)
    b = jax.random.uniform(k_b, (feature_dim,),
                           minval=-bound, maxval=bound, dtype=jnp.float32)

    # Deterministic random graph: each edge picks a destination node.
    dst_idx = jax.random.randint(k_d, (num_edges,), 0, num_dst, dtype=jnp.int32)

    out = a_mean_forward(src_emb, dst_idx, num_dst, W, b)
    out = jax.block_until_ready(out)

    ref = reference_forward(src_emb, dst_idx, num_dst, W, b)
    assert out.shape == (num_dst, feature_dim)
    # bf16 aggregation + approx reciprocal -> relaxed (but still tight) tolerance
    assert jnp.allclose(out, ref, atol=1e-2, rtol=1e-2), \
        float(jnp.max(jnp.abs(out - ref)))

    print("KERNEL_OK")
</pallas_src>

<mosaic_0001>
module attributes {stable_mosaic.version = 11 : i64} {
  func.func @a_mean_kernel(%arg0: i32, %arg1: i32, %arg2: memref<256x128xf32, #tpu.memory_space<vmem>>, %arg3: memref<128x128xf32, #tpu.memory_space<vmem>>, %arg4: memref<1x128xf32, #tpu.memory_space<vmem>>, %arg5: memref<128x256xbf16, #tpu.memory_space<vmem>>, %arg6: memref<128x1xf32, #tpu.memory_space<vmem>>, %arg7: memref<128x128xf32, #tpu.memory_space<vmem>>, %arg8: memref<128x128xf32, #tpu.memory_space<vmem>>, %arg9: memref<128x128xf32, #tpu.memory_space<vmem>>) attributes {dimension_semantics = [#tpu.dimension_semantics<parallel>, #tpu.dimension_semantics<arbitrary>], iteration_bounds = array<i64: 2, 2>, scalar_prefetch = 0 : i64, scratch_operands = 1 : i64, tpu.core_type = #tpu.core_type<tc>, window_params = [{transform_indices = @transform_0, window_bounds = array<i64: 256, 128>}, {pipeline_mode = #tpu.pipeline_mode<synchronous>, transform_indices = @transform_1, window_bounds = array<i64: 128, 128>}, {pipeline_mode = #tpu.pipeline_mode<synchronous>, transform_indices = @transform_2, window_bounds = array<i64: 1, 128>}, {transform_indices = @transform_3, window_bounds = array<i64: 128, 256>}, {transform_indices = @transform_4, window_bounds = array<i64: 128, 1>}, {transform_indices = @transform_5, window_bounds = array<i64: 128, 128>}, {transform_indices = @transform_6, window_bounds = array<i64: 128, 128>}]} {
    %c0_i32 = arith.constant 0 : i32
    %0 = arith.cmpi eq, %arg1, %c0_i32 : i32
    %1 = arith.extui %0 : i1 to i32
    %c0_i32_0 = arith.constant 0 : i32
    %2 = arith.cmpi ne, %1, %c0_i32_0 : i32
    scf.if %2 {
      %cst_15 = arith.constant 0.000000e+00 : f32
      %20 = vector.broadcast %cst_15 : f32 to vector<128x128xf32>
      %c0_16 = arith.constant 0 : index
      %c0_17 = arith.constant 0 : index
      %21 = vector.load %arg9[%c0_16, %c0_17] : memref<128x128xf32, #tpu.memory_space<vmem>>, vector<128x128xf32>
      tpu.vector_store %arg9[%c0_16, %c0_17], %20 {strides = array<i32>} : memref<128x128xf32, #tpu.memory_space<vmem>>, vector<128x128xf32>,
    } else {
    }
    %c0 = arith.constant 0 : index
    %c0_1 = arith.constant 0 : index
    %3 = vector.load %arg2[%c0, %c0_1] : memref<256x128xf32, #tpu.memory_space<vmem>>, vector<256x128xf32>
    %c0_2 = arith.constant 0 : index
    %c0_3 = arith.constant 0 : index
    %4 = vector.load %arg3[%c0_2, %c0_3] : memref<128x128xf32, #tpu.memory_space<vmem>>, vector<128x128xf32>
    %cst = arith.constant dense<0.000000e+00> : vector<256x128xf32>
    %5 = tpu.matmul %3, %4, %cst {dimension_numbers = #tpu.dot_dimension_numbers<[1], [0], [0], [1], [0, 0, 1, 1], [], []>} : vector<256x128xf32>, vector<128x128xf32>, vector<256x128xf32> -> vector<256x128xf32>
    %c0_4 = arith.constant 0 : index
    %c0_5 = arith.constant 0 : index
    %6 = vector.load %arg4[%c0_4, %c0_5] : memref<1x128xf32, #tpu.memory_space<vmem>>, vector<1x128xf32>
    %7 = vector.broadcast %6 : vector<1x128xf32> to vector<256x128xf32>
    %8 = arith.addf %5, %7 : vector<256x128xf32>
    %cst_6 = arith.constant 0.000000e+00 : f32
    %9 = vector.broadcast %cst_6 : f32 to vector<256x128xf32>
    %10 = arith.maximumf %8, %9 : vector<256x128xf32>
    %c0_7 = arith.constant 0 : index
    %c0_8 = arith.constant 0 : index
    %11 = vector.load %arg9[%c0_7, %c0_8] : memref<128x128xf32, #tpu.memory_space<vmem>>, vector<128x128xf32>
    %c0_9 = arith.constant 0 : index
    %c0_10 = arith.constant 0 : index
    %12 = vector.load %arg5[%c0_9, %c0_10] : memref<128x256xbf16, #tpu.memory_space<vmem>>, vector<128x256xbf16>
    %13 = arith.truncf %10 : vector<256x128xf32> to vector<256x128xbf16>
    %cst_11 = arith.constant dense<0.000000e+00> : vector<128x128xf32>
    %14 = tpu.matmul %12, %13, %cst_11 {dimension_numbers = #tpu.dot_dimension_numbers<[1], [0], [0], [1], [0, 0, 1, 1], [], []>} : vector<128x256xbf16>, vector<256x128xbf16>, vector<128x128xf32> -> vector<128x128xf32>
    %15 = arith.addf %11, %14 : vector<128x128xf32>
    %c0_12 = arith.constant 0 : index
    %c0_13 = arith.constant 0 : index
    %16 = vector.load %arg9[%c0_12, %c0_13] : memref<128x128xf32, #tpu.memory_space<vmem>>, vector<128x128xf32>
    tpu.vector_store %arg9[%c0_12, %c0_13], %15 {strides = array<i32>} : memref<128x128xf32, #tpu.memory_space<vmem>>, vector<128x128xf32>,
    %c1_i32 = arith.constant 1 : i32
    %17 = arith.cmpi eq, %arg1, %c1_i32 : i32
    %18 = arith.extui %17 : i1 to i32
    %c0_i32_14 = arith.constant 0 : i32
    %19 = arith.cmpi ne, %18, %c0_i32_14 : i32
    scf.if %19 {
      %c0_15 = arith.constant 0 : index
      %c0_16 = arith.constant 0 : index
      %20 = vector.load %arg6[%c0_15, %c0_16] : memref<128x1xf32, #tpu.memory_space<vmem>>, vector<128x1xf32>
      %21 = tpu.reciprocal %20 {approx = true} : vector<128x1xf32> -> vector<128x1xf32>
      %c0_17 = arith.constant 0 : index
      %c0_18 = arith.constant 0 : index
      %22 = vector.load %arg9[%c0_17, %c0_18] : memref<128x128xf32, #tpu.memory_space<vmem>>, vector<128x128xf32>
      %23 = vector.broadcast %21 : vector<128x1xf32> to vector<128x128xf32>
      %24 = arith.mulf %22, %23 : vector<128x128xf32>
      %c0_19 = arith.constant 0 : index
      %c0_20 = arith.constant 0 : index
      %25 = vector.load %arg7[%c0_19, %c0_20] : memref<128x128xf32, #tpu.memory_space<vmem>>, vector<128x128xf32>
      %26 = arith.addf %24, %25 : vector<128x128xf32>
      %c0_21 = arith.constant 0 : index
      %c0_22 = arith.constant 0 : index
      %27 = vector.load %arg8[%c0_21, %c0_22] : memref<128x128xf32, #tpu.memory_space<vmem>>, vector<128x128xf32>
      tpu.vector_store %arg8[%c0_21, %c0_22], %26 {strides = array<i32>} : memref<128x128xf32, #tpu.memory_space<vmem>>, vector<128x128xf32>,
    } else {
    }
    return
  }
  func.func @transform_0(%arg0: i32, %arg1: i32) -> (i32, i32) {
    %c0_i32 = arith.constant 0 : i32
    %c0_i32_0 = arith.constant 0 : i32
    return %arg1, %c0_i32 : i32, i32
  }
  func.func @transform_1(%arg0: i32, %arg1: i32) -> (i32, i32) {
    %c0_i32 = arith.constant 0 : i32
    %c0_i32_0 = arith.constant 0 : i32
    %c0_i32_1 = arith.constant 0 : i32
    return %c0_i32, %c0_i32_0 : i32, i32
  }
  func.func @transform_2(%arg0: i32, %arg1: i32) -> (i32, i32) {
    %c0_i32 = arith.constant 0 : i32
    %c0_i32_0 = arith.constant 0 : i32
    %c0_i32_1 = arith.constant 0 : i32
    return %c0_i32, %c0_i32_0 : i32, i32
  }
  func.func @transform_3(%arg0: i32, %arg1: i32) -> (i32, i32) {
    %c0_i32 = arith.constant 0 : i32
    return %arg0, %arg1 : i32, i32
  }
  func.func @transform_4(%arg0: i32, %arg1: i32) -> (i32, i32) {
    %c0_i32 = arith.constant 0 : i32
    %c0_i32_0 = arith.constant 0 : i32
    return %arg0, %c0_i32 : i32, i32
  }
  func.func @transform_5(%arg0: i32, %arg1: i32) -> (i32, i32) {
    %c0_i32 = arith.constant 0 : i32
    %c0_i32_0 = arith.constant 0 : i32
    return %arg0, %c0_i32 : i32, i32
  }
  func.func @transform_6(%arg0: i32, %arg1: i32) -> (i32, i32) {
    %c0_i32 = arith.constant 0 : i32
    %c0_i32_0 = arith.constant 0 : i32
    return %arg0, %c0_i32 : i32, i32
  }
}

</mosaic_0001>

<llo_original>
// kernel: tpu_custom_call.1
$region0: #{tpu_custom_call.1}
  #allocation0 [shape = 'u32[]', space=smem, size = 0x4, offset = 0x4, fixed_abs, tag = 'smem constant byte address 0x4 - core index']
  #allocation1 [shape = 'u32[144,128]{1,0:T(1,128)}', space=vmem, size = 0x12000, scoped, tag = 'internal scratch']
  #allocation2 [shape = 'f32[128,128]{1,0:T(8,128)}', space=vmem, size = 0x10000, scoped, tag = 'scratch operand']
  %s0 = inlined_call_operand.hbm [shape: f32[512,128], index: 0, kind: input, shape index: {}]
  %s1 = inlined_call_operand.hbm [shape: f32[128,128], index: 1, kind: input, shape index: {}]
  %s2 = inlined_call_operand.vmem [shape: f32[1,128], index: 2, kind: input, shape index: {}]
  %s3 = inlined_call_operand.hbm [shape: bf16[256,512], index: 3, kind: input, shape index: {}]
  %s4 = inlined_call_operand.vmem [shape: f32[256,1], index: 4, kind: input, shape index: {}]
  %s5 = inlined_call_operand.vmem [shape: f32[256,128], index: 5, kind: input, shape index: {}]
  %s6 = inlined_call_operand.hbm [shape: f32[256,128], index: 6, kind: output, shape index: {}]
  %s7 = sld [smem:[#allocation0]]
  $region77: #{tpu_custom_call.1} parent=0
    _
  %s9 = ssub.s32 1, %s7
  %s10 = scalar_select 0, %s9, %s7
  $region1: #{tpu_custom_call.1} parent=0
    #allocation3 [shape = 'u8[262144]{0}', space=vmem, size = 0x40000, scoped, tag = 'input window, operand 0']
    #allocation4 [shape = 's32[2]{0}', space=sflag, size = 0x8, scoped, tag = 'scoped memory for tpu_custom_call.1']
    #allocation5 [shape = 's32[2]{0}', space=sflag, size = 0x8, scoped, tag = 'scoped memory for tpu_custom_call.1']
    #allocation6 [shape = 'u8[65536]{0}', space=vmem, size = 0x10000, scoped, tag = 'input window, operand 1, single buffered']
    #allocation7 [shape = 's32[1]{0}', space=sflag, size = 0x4, scoped, tag = 'scoped memory for tpu_custom_call.1']
    #allocation8 [shape = 'u8[131072]{0}', space=vmem, size = 0x20000, scoped, tag = 'input window, operand 3']
    #allocation9 [shape = 'u8[131072]{0}', space=vmem, size = 0x20000, scoped, tag = 'output window, operand 0']
    %11 = vsyncpa [#allocation4], 0
    %s12 = scalar_lea.sflag [#allocation4], 1
    %13 = vsyncpa %s12, 0
    %14 = vsyncpa [#allocation7], 0
    %15 = vsyncpa [#allocation5], 0
    %s16 = scalar_lea.sflag [#allocation5], 1
    %17 = vsyncpa %s16, 0
    loop: start=0, step=1, limit=6
    $region2: #{tpu_custom_call.1} parent=1 // loop_pre_header
      _
    $region3: #{tpu_custom_call.1} parent=1 // loop_header
      %s19 = sphi 0, %s23
      %p20 = scmp.ge.s32.totalorder %s19, 6
      %s26 = sphi 0, %s38
      %s27 = sphi 0, %s34
      %s28 = sphi 0, %s26
      %s29 = sphi 0, %s27
      %s30 = sphi 0, %s28
      %s31 = sphi 0, %s29
      %s41 = sphi 0, %s43
      %s44 = sphi 0, %s41
      %s45 = sphi 0, %s44
      %s61 = sphi 0, %s45
      %s65 = sphi 0, %s65
      %s67 = sphi 0, %s65
      %s68 = sphi 0, %s67
      %s82 = sphi 0, %s68
      %s86 = sphi 0, %s86
      %s88 = sphi 0, %s86
      %s89 = sphi 0, %s88
      %s103 = sphi 0, %s89
      %s111 = sphi 0, %s113
      %s114 = sphi 0, %s111
      %s115 = sphi 0, %s114
      %s131 = sphi 0, %s115
      %s137 = sphi 0, %s139
      %s140 = sphi 0, %s137
      %s141 = sphi 0, %s140
      %s157 = sphi 0, %s141
      %s163 = sphi 0, %s165
      %s166 = sphi 0, %s163
      %s167 = sphi 0, %s166
      %s183 = sphi 0, %s167
      %s189 = sphi 0, %s191
      %s192 = sphi 0, %s189
      %s193 = sphi 0, %s192
      %s209 = sphi 0, %s193
    $region4: #{tpu_custom_call.1} parent=1 // loop_header_branch
      %22 = sbr.rel (%p20) target = $region8
    $region5: #{tpu_custom_call.1} parent=1 // loop_body
      %s24 = ssub.s32 %s19, 1
      %s25 = ssub.s32 %s19, 2
      %s32 = sadd.s32 1, %s27
      %p33 = scmp.ge.s32.totalorder %s32, 2
      %s34 = scalar_select %p33, 0, %s32
      %s35 = sadd.s32 1, %s26
      %s36 = scalar_select %p33, %s35, %s26
      %p37 = scmp.ge.s32.totalorder %s36, 2
      %s38 = scalar_select %p37, 0, %s36
      %s39 = ssub.s32 %s27, %s34
      %p40 = scmp.eq.s32.totalorder %s39, 0
      %s42 = sadd.s32 %s41, 1
      %s43 = scalar_select %p40, %s41, %s42
      %p46 = pneg %p40
      %p47 = scmp.eq.s32.totalorder %s19, 3
      %p48 = por %p46, %p47
      %p49 = scmp.ne.s32.totalorder %s41, %s44
      %p50 = scmp.eq.s32.totalorder %s19, 0
      %p51 = por %p49, %p50
      %p52 = scmp.ne.s32.totalorder %s41, %s44
      %p53 = scmp.eq.s32.totalorder %s24, 3
      %p54 = por %p52, %p53
      %p55 = scmp.ne.s32.totalorder %s44, %s45
      %p56 = scmp.eq.s32.totalorder %s24, 0
      %p57 = por %p55, %p56
      %p58 = scmp.ne.s32.totalorder %s44, %s45
      %p59 = scmp.eq.s32.totalorder %s25, 3
      %p60 = por %p58, %p59
      %p62 = scmp.ne.s32.totalorder %s45, %s61
      %p63 = scmp.eq.s32.totalorder %s25, 0
      %p64 = por %p62, %p63
      %s66 = sadd.s32 %s65, 1
      %p69 = scmp.eq.s32.totalorder %s19, 3
      %p70 = scmp.ne.s32.totalorder %s65, %s67
      %p71 = scmp.eq.s32.totalorder %s19, 0
      %p72 = por %p70, %p71
      %p73 = scmp.ne.s32.totalorder %s65, %s67
      %p74 = scmp.eq.s32.totalorder %s24, 3
      %p75 = por %p73, %p74
      %p76 = scmp.ne.s32.totalorder %s67, %s68
      %p77 = scmp.eq.s32.totalorder %s24, 0
      %p78 = por %p76, %p77
      %p79 = scmp.ne.s32.totalorder %s67, %s68
      %p80 = scmp.eq.s32.totalorder %s25, 3
      %p81 = por %p79, %p80
      %p83 = scmp.ne.s32.totalorder %s68, %s82
      %p84 = scmp.eq.s32.totalorder %s25, 0
      %p85 = por %p83, %p84
      %s87 = sadd.s32 %s86, 1
      %p90 = scmp.eq.s32.totalorder %s19, 3
      %p91 = scmp.ne.s32.totalorder %s86, %s88
      %p92 = scmp.eq.s32.totalorder %s19, 0
      %p93 = por %p91, %p92
      %p94 = scmp.ne.s32.totalorder %s86, %s88
      %p95 = scmp.eq.s32.totalorder %s24, 3
      %p96 = por %p94, %p95
      %p97 = scmp.ne.s32.totalorder %s88, %s89
      %p98 = scmp.eq.s32.totalorder %s24, 0
      %p99 = por %p97, %p98
      %p100 = scmp.ne.s32.totalorder %s88, %s89
      %p101 = scmp.eq.s32.totalorder %s25, 3
      %p102 = por %p100, %p101
      %p104 = scmp.ne.s32.totalorder %s89, %s103
      %p105 = scmp.eq.s32.totalorder %s25, 0
      %p106 = por %p104, %p105
      %s107 = ssub.s32 %s26, %s38
      %s108 = ssub.s32 %s27, %s34
      %s109 = sor.u32 %s107, %s108
      %p110 = scmp.eq.s32.totalorder %s109, 0
      %s112 = sadd.s32 %s111, 1
      %s113 = scalar_select %p110, %s111, %s112
      %p116 = pneg %p110
      %p117 = scmp.eq.s32.totalorder %s19, 3
      %p118 = por %p116, %p117
      %p119 = scmp.ne.s32.totalorder %s111, %s114
      %p120 = scmp.eq.s32.totalorder %s19, 0
      %p121 = por %p119, %p120
      %p122 = scmp.ne.s32.totalorder %s111, %s114
      %p123 = scmp.eq.s32.totalorder %s24, 3
      %p124 = por %p122, %p123
      %p125 = scmp.ne.s32.totalorder %s114, %s115
      %p126 = scmp.eq.s32.totalorder %s24, 0
      %p127 = por %p125, %p126
      %p128 = scmp.ne.s32.totalorder %s114, %s115
      %p129 = scmp.eq.s32.totalorder %s25, 3
      %p130 = por %p128, %p129
      %p132 = scmp.ne.s32.totalorder %s115, %s131
      %p133 = scmp.eq.s32.totalorder %s25, 0
      %p134 = por %p132, %p133
      %s135 = ssub.s32 %s26, %s38
      %p136 = scmp.eq.s32.totalorder %s135, 0
      %s138 = sadd.s32 %s137, 1
      %s139 = scalar_select %p136, %s137, %s138
      %p142 = pneg %p136
      %p143 = scmp.eq.s32.totalorder %s19, 3
      %p144 = por %p142, %p143
      %p145 = scmp.ne.s32.totalorder %s137, %s140
      %p146 = scmp.eq.s32.totalorder %s19, 0
      %p147 = por %p145, %p146
      %p148 = scmp.ne.s32.totalorder %s137, %s140
      %p149 = scmp.eq.s32.totalorder %s24, 3
      %p150 = por %p148, %p149
      %p151 = scmp.ne.s32.totalorder %s140, %s141
      %p152 = scmp.eq.s32.totalorder %s24, 0
      %p153 = por %p151, %p152
      %p154 = scmp.ne.s32.totalorder %s140, %s141
      %p155 = scmp.eq.s32.totalorder %s25, 3
      %p156 = por %p154, %p155
      %p158 = scmp.ne.s32.totalorder %s141, %s157
      %p159 = scmp.eq.s32.totalorder %s25, 0
      %p160 = por %p158, %p159
      %s161 = ssub.s32 %s26, %s38
      %p162 = scmp.eq.s32.totalorder %s161, 0
      %s164 = sadd.s32 %s163, 1
      %s165 = scalar_select %p162, %s163, %s164
      %p168 = pneg %p162
      %p169 = scmp.eq.s32.totalorder %s19, 3
      %p170 = por %p168, %p169
      %p171 = scmp.ne.s32.totalorder %s163, %s166
      %p172 = scmp.eq.s32.totalorder %s19, 0
      %p173 = por %p171, %p172
      %p174 = scmp.ne.s32.totalorder %s163, %s166
      %p175 = scmp.eq.s32.totalorder %s24, 3
      %p176 = por %p174, %p175
      %p177 = scmp.ne.s32.totalorder %s166, %s167
      %p178 = scmp.eq.s32.totalorder %s24, 0
      %p179 = por %p177, %p178
      %p180 = scmp.ne.s32.totalorder %s166, %s167
      %p181 = scmp.eq.s32.totalorder %s25, 3
      %p182 = por %p180, %p181
      %p184 = scmp.ne.s32.totalorder %s167, %s183
      %p185 = scmp.eq.s32.totalorder %s25, 0
      %p186 = por %p184, %p185
      %s187 = ssub.s32 %s26, %s38
      %p188 = scmp.eq.s32.totalorder %s187, 0
      %s190 = sadd.s32 %s189, 1
      %s191 = scalar_select %p188, %s189, %s190
      %p194 = pneg %p188
      %p195 = scmp.eq.s32.totalorder %s19, 3
      %p196 = por %p194, %p195
      %p197 = scmp.ne.s32.totalorder %s189, %s192
      %p198 = scmp.eq.s32.totalorder %s19, 0
      %p199 = por %p197, %p198
      %p200 = scmp.ne.s32.totalorder %s189, %s192
      %p201 = scmp.eq.s32.totalorder %s24, 3
      %p202 = por %p200, %p201
      %p203 = scmp.ne.s32.totalorder %s192, %s193
      %p204 = scmp.eq.s32.totalorder %s24, 0
      %p205 = por %p203, %p204
      %p206 = scmp.ne.s32.totalorder %s192, %s193
      %p207 = scmp.eq.s32.totalorder %s25, 3
      %p208 = por %p206, %p207
      %p210 = scmp.ne.s32.totalorder %s193, %s209
      %p211 = scmp.eq.s32.totalorder %s25, 0
      %p212 = por %p210, %p211
      %p213 = scmp.le.s32.totalorder 1, %s19
      %p214 = scmp.lt.s32.totalorder %s19, 5
      %p215 = pnand %p213, %p214
      %p216 = pneg %p215
      // Predicated region
      $region9: #{tpu_custom_call.1} parent=5 // pred_check
        _
      $region10: #{tpu_custom_call.1} parent=5 // pred_check_branch
        %218 = sbr.rel (%p215) target = $region12
      $region11: #{tpu_custom_call.1} parent=5 // pred_region
        %s219 = ssub.s32 %s19, 1
        // Predicated region
        $region13: #{tpu_custom_call.1} parent=11 // pred_check
          %p220 = pneg %p78
        $region14: #{tpu_custom_call.1} parent=11 // pred_check_branch
          %222 = sbr.rel (%p220) target = $region16
        $region15: #{tpu_custom_call.1} parent=11 // pred_region
          %s224 = ssub.s32 2048, 2048
          %225 = vsyncadd [#allocation7], %s224
          %s226 = sshll.u32 [#allocation6], 4
          %s227 = int_to_ptr.vmem [resolvable:$true] %s226
          %232 = dma.hbm_to_vmem [thread:$0]  %s1, 2048, %s227, [#allocation7], 128, 128, 8
        $region16: #{tpu_custom_call.1} parent=11 // pred_fallthru
          _
        // Predicated region
        $region17: #{tpu_custom_call.1} parent=11 // pred_check
          %p233 = pneg %p99
        $region18: #{tpu_custom_call.1} parent=11 // pred_check_branch
          %235 = sbr.rel (%p233) target = $region20
        $region19: #{tpu_custom_call.1} parent=11 // pred_region
          _
        $region20: #{tpu_custom_call.1} parent=11 // pred_fallthru
          _
      $region12: #{tpu_custom_call.1} parent=5 // pred_fallthru
        _
      %p236 = scmp.lt.s32.totalorder %s19, 4
      // Predicated region
      $region21: #{tpu_custom_call.1} parent=5 // pred_check
        %p237 = pneg %p236
      $region22: #{tpu_custom_call.1} parent=5 // pred_check_branch
        %239 = sbr.rel (%p237) target = $region24
      $region23: #{tpu_custom_call.1} parent=5 // pred_region
        // Predicated region
        $region25: #{tpu_custom_call.1} parent=23 // pred_check
          %p240 = pneg %p51
        $region26: #{tpu_custom_call.1} parent=23 // pred_check_branch
          %242 = sbr.rel (%p240) target = $region28
        $region27: #{tpu_custom_call.1} parent=23 // pred_region
          %s243 = sand.u32 %s19, 1
          %s244 = scalar_lea.sflag [#allocation4], %s243
          %s245 = sand.u32 %s41, 1
          %s246 = smul.addr %s245, 256
          %s247 = scalar_lea.vmem [#allocation3], %s246
          %s248 = smul.u32 32, %s27
          %s250 = ssub.s32 4096, 4096
          %251 = vsyncadd %s244, %s250
          %s252 = smul.addr %s248, 128
          %s253 = scalar_lea.hbm %s0, %s252
          %s254 = sshll.u32 %s247, 4
          %s255 = int_to_ptr.vmem [resolvable:$true] %s254
          %260 = dma.hbm_to_vmem [thread:$0]  %s253, 4096, %s255, %s244, 128, 128, 8
        $region28: #{tpu_custom_call.1} parent=23 // pred_fallthru
          _
        // Predicated region
        $region29: #{tpu_custom_call.1} parent=23 // pred_check
          %p261 = pneg %p121
        $region30: #{tpu_custom_call.1} parent=23 // pred_check_branch
          %263 = sbr.rel (%p261) target = $region32
        $region31: #{tpu_custom_call.1} parent=23 // pred_region
          %s264 = sand.u32 %s19, 1
          %s265 = scalar_lea.sflag [#allocation4], %s264
          %s266 = sand.u32 %s111, 1
          %s267 = smul.addr %s266, 128
          %s268 = scalar_lea.vmem [#allocation8], %s267
          %s269 = smul.u32 16, %s26
          %s270 = smul.u32 2, %s27
          %s272 = ssub.s32 2048, 2048
          %273 = vsyncadd %s265, %s272
          %s274 = smul.addr %s269, 4
          %s275 = sadd.s32 %s270, %s274
          %s276 = smul.addr %s275, 64
          %s277 = scalar_lea.hbm %s3, %s276
          %s278 = sshll.u32 %s268, 4
          %s279 = int_to_ptr.vmem [resolvable:$true] %s278
          %284 = dma.hbm_to_vmem [thread:$0]  %s277, 2048, %s279, %s265, 256, 128, 8
        $region32: #{tpu_custom_call.1} parent=23 // pred_fallthru
          _
        // Predicated region
        $region33: #{tpu_custom_call.1} parent=23 // pred_check
          %p285 = pneg %p147
        $region34: #{tpu_custom_call.1} parent=23 // pred_check_branch
          %287 = sbr.rel (%p285) target = $region36
        $region35: #{tpu_custom_call.1} parent=23 // pred_region
          %s288 = smul.u32 16, %s26
          %p289 = scmp.lt.s32.totalorder %s288, 31
          %s290 = scalar_select %p289, %s288, 31
          %s291 = smul.addr %s290, 8
          %s292 = scalar_lea.vmem %s4, %s291
          %s293 = smul.u32 16, %s26
        $region36: #{tpu_custom_call.1} parent=23 // pred_fallthru
          _
        // Predicated region
        $region37: #{tpu_custom_call.1} parent=23 // pred_check
          %p294 = pneg %p173
        $region38: #{tpu_custom_call.1} parent=23 // pred_check_branch
          %296 = sbr.rel (%p294) target = $region40
        $region39: #{tpu_custom_call.1} parent=23 // pred_region
          %s297 = smul.u32 16, %s26
          %p298 = scmp.lt.s32.totalorder %s297, 31
          %s299 = scalar_select %p298, %s297, 31
          %s300 = smul.addr %s299, 8
          %s301 = scalar_lea.vmem %s5, %s300
          %s302 = smul.u32 16, %s26
        $region40: #{tpu_custom_call.1} parent=23 // pred_fallthru
          _
      $region24: #{tpu_custom_call.1} parent=5 // pred_fallthru
        _
      %p303 = scmp.le.s32.totalorder 1, %s19
      %p304 = scmp.lt.s32.totalorder %s19, 5
      %p305 = pnand %p303, %p304
      %p306 = pneg %p305
      // Predicated region
      $region41: #{tpu_custom_call.1} parent=5 // pred_check
        _
      $region42: #{tpu_custom_call.1} parent=5 // pred_check_branch
        %308 = sbr.rel (%p305) target = $region44
      $region43: #{tpu_custom_call.1} parent=5 // pred_region
        %s309 = ssub.s32 %s19, 1
        %s310 = sand.u32 %s24, 1
        %s311 = scalar_lea.sflag [#allocation4], %s310
        %s312 = sand.u32 %s44, 1
        %s313 = smul.addr %s312, 256
        %s314 = scalar_lea.vmem [#allocation3], %s313
        // Predicated region
        $region45: #{tpu_custom_call.1} parent=43 // pred_check
          %p315 = pneg %p57
        $region46: #{tpu_custom_call.1} parent=43 // pred_check_branch
          %317 = sbr.rel (%p315) target = $region48
        $region47: #{tpu_custom_call.1} parent=43 // pred_region
          %318 = dma.done %s311, 4096
        $region48: #{tpu_custom_call.1} parent=43 // pred_fallthru
          _
        // Predicated region
        $region49: #{tpu_custom_call.1} parent=43 // pred_check
          %p319 = pneg %p78
        $region50: #{tpu_custom_call.1} parent=43 // pred_check_branch
          %321 = sbr.rel (%p319) target = $region52
        $region51: #{tpu_custom_call.1} parent=43 // pred_region
          %322 = dma.done [#allocation7], 2048
        $region52: #{tpu_custom_call.1} parent=43 // pred_fallthru
          _
        %s323 = sand.u32 %s24, 1
        %s324 = scalar_lea.sflag [#allocation4], %s323
        %s325 = sand.u32 %s114, 1
        %s326 = smul.addr %s325, 128
        %s327 = scalar_lea.vmem [#allocation8], %s326
        // Predicated region
        $region53: #{tpu_custom_call.1} parent=43 // pred_check
          %p328 = pneg %p127
        $region54: #{tpu_custom_call.1} parent=43 // pred_check_branch
          %330 = sbr.rel (%p328) target = $region56
        $region55: #{tpu_custom_call.1} parent=43 // pred_region
          %331 = dma.done %s324, 2048
        $region56: #{tpu_custom_call.1} parent=43 // pred_fallthru
          _
        %s332 = sand.u32 %s24, 1
        %s333 = scalar_lea.sflag [#allocation4], %s332
        %s334 = sand.u32 %s44, 1
        %s335 = smul.addr %s334, 256
        %s336 = scalar_lea.vmem [#allocation3], %s335
        %p337 = pneg %p57
        %p338 = pneg %p54
        %p339 = pneg %p78
        %p340 = pneg %p75
        %p341 = pneg %p99
        %p342 = pneg %p96
        %s343 = sand.u32 %s24, 1
        %s344 = scalar_lea.sflag [#allocation4], %s343
        %s345 = sand.u32 %s114, 1
        %s346 = smul.addr %s345, 128
        %s347 = scalar_lea.vmem [#allocation8], %s346
        %p348 = pneg %p127
        %p349 = pneg %p124
        %s350 = smul.u32 16, %s28
        %p351 = scmp.lt.s32.totalorder %s350, 31
        %s352 = scalar_select %p351, %s350, 31
        %s353 = smul.addr %s352, 8
        %s354 = scalar_lea.vmem %s4, %s353
        %p355 = pneg %p153
        %p356 = pneg %p150
        %s357 = smul.u32 16, %s28
        %p358 = scmp.lt.s32.totalorder %s357, 31
        %s359 = scalar_select %p358, %s357, 31
        %s360 = smul.addr %s359, 8
        %s361 = scalar_lea.vmem %s5, %s360
        %p362 = pneg %p179
        %p363 = pneg %p176
        %p364 = pneg %p205
        %p365 = pneg %p202
        %s366 = sand.u32 %s192, 1
        %s367 = scalar_lea.sflag [#allocation5], %s366
        %s368 = sand.u32 %s192, 1
        %s369 = smul.addr %s368, 128
        %s370 = scalar_lea.vmem [#allocation9], %s369
        %s371 = smul.u32 32, %s29
        %s372 = smul.u32 16, %s28
        %s373 = smul.u32 2, %s29
        %s374 = smul.u32 16, %s28
        %p375 = scmp.lt.s32.totalorder %s374, 31
        %s376 = scalar_select %p375, %s374, 31
        %s377 = smul.addr %s376, 8
        %s378 = scalar_lea.vmem %s4, %s377
        %s379 = smul.u32 16, %s28
        %s380 = smul.u32 16, %s28
        %p381 = scmp.lt.s32.totalorder %s380, 31
        %s382 = scalar_select %p381, %s380, 31
        %s383 = smul.addr %s382, 8
        %s384 = scalar_lea.vmem %s5, %s383
        %s385 = smul.u32 16, %s28
        %s386 = smul.u32 16, %s28
        %p388 = scmp.eq.s32.totalorder %s29, 0
        // Predicated region
        $region57: #{tpu_custom_call.1} parent=43 // pred_check
          %p389 = pneg %p388
        $region58: #{tpu_custom_call.1} parent=43 // pred_check_branch
          %391 = sbr.rel (%p389) target = $region60
        $region59: #{tpu_custom_call.1} parent=43 // pred_region
          %392 = vst [vmem:[#allocation2] sm:$0xff] 0.0
          %393 = vst [vmem:[#allocation2 + $0x8] sm:$0xff] 0.0
          %394 = vst [vmem:[#allocation2 + $0x10] sm:$0xff] 0.0
          %395 = vst [vmem:[#allocation2 + $0x18] sm:$0xff] 0.0
          %396 = vst [vmem:[#allocation2 + $0x20] sm:$0xff] 0.0
          %397 = vst [vmem:[#allocation2 + $0x28] sm:$0xff] 0.0
          %398 = vst [vmem:[#allocation2 + $0x30] sm:$0xff] 0.0
          %399 = vst [vmem:[#allocation2 + $0x38] sm:$0xff] 0.0
          %400 = vst [vmem:[#allocation2 + $0x40] sm:$0xff] 0.0
          %401 = vst [vmem:[#allocation2 + $0x48] sm:$0xff] 0.0
          %402 = vst [vmem:[#allocation2 + $0x50] sm:$0xff] 0.0
          %403 = vst [vmem:[#allocation2 + $0x58] sm:$0xff] 0.0
          %404 = vst [vmem:[#allocation2 + $0x60] sm:$0xff] 0.0
          %405 = vst [vmem:[#allocation2 + $0x68] sm:$0xff] 0.0
          %406 = vst [vmem:[#allocation2 + $0x70] sm:$0xff] 0.0
          %407 = vst [vmem:[#allocation2 + $0x78] sm:$0xff] 0.0
        $region60: #{tpu_custom_call.1} parent=43 // pred_fallthru
          _
        %v408 = vld [vmem:[%s314] sm:$0xff]
        %v409 = vld [vmem:[%s314 + $0x8] sm:$0xff]
        %v410 = vld [vmem:[%s314 + $0x10] sm:$0xff]
        %v411 = vld [vmem:[%s314 + $0x18] sm:$0xff]
        %v412 = vld [vmem:[%s314 + $0x20] sm:$0xff]
        %v413 = vld [vmem:[%s314 + $0x28] sm:$0xff]
        %v414 = vld [vmem:[%s314 + $0x30] sm:$0xff]
        %v415 = vld [vmem:[%s314 + $0x38] sm:$0xff]
        %v416 = vld [vmem:[%s314 + $0x40] sm:$0xff]
        %v417 = vld [vmem:[%s314 + $0x48] sm:$0xff]
        %v418 = vld [vmem:[%s314 + $0x50] sm:$0xff]
        %v419 = vld [vmem:[%s314 + $0x58] sm:$0xff]
        %v420 = vld [vmem:[%s314 + $0x60] sm:$0xff]
        %v421 = vld [vmem:[%s314 + $0x68] sm:$0xff]
        %v422 = vld [vmem:[%s314 + $0x70] sm:$0xff]
        %v423 = vld [vmem:[%s314 + $0x78] sm:$0xff]
        %v424 = vld [vmem:[%s314 + $0x80] sm:$0xff]
        %v425 = vld [vmem:[%s314 + $0x88] sm:$0xff]
        %v426 = vld [vmem:[%s314 + $0x90] sm:$0xff]
        %v427 = vld [vmem:[%s314 + $0x98] sm:$0xff]
        %v428 = vld [vmem:[%s314 + $0xa0] sm:$0xff]
        %v429 = vld [vmem:[%s314 + $0xa8] sm:$0xff]
        %v430 = vld [vmem:[%s314 + $0xb0] sm:$0xff]
        %v431 = vld [vmem:[%s314 + $0xb8] sm:$0xff]
        %v432 = vld [vmem:[%s314 + $0xc0] sm:$0xff]
        %v433 = vld [vmem:[%s314 + $0xc8] sm:$0xff]
        %v434 = vld [vmem:[%s314 + $0xd0] sm:$0xff]
        %v435 = vld [vmem:[%s314 + $0xd8] sm:$0xff]
        %v436 = vld [vmem:[%s314 + $0xe0] sm:$0xff]
        %v437 = vld [vmem:[%s314 + $0xe8] sm:$0xff]
        %v438 = vld [vmem:[%s314 + $0xf0] sm:$0xff]
        %v439 = vld [vmem:[%s314 + $0xf8] sm:$0xff]
        %v440 = vld [vmem:[#allocation6] sm:$0xff]
        %v441 = vld [vmem:[#allocation6 + $0x8] sm:$0xff]
        %v442 = vld [vmem:[#allocation6 + $0x10] sm:$0xff]
        %v443 = vld [vmem:[#allocation6 + $0x18] sm:$0xff]
        %v444 = vld [vmem:[#allocation6 + $0x20] sm:$0xff]
        %v445 = vld [vmem:[#allocation6 + $0x28] sm:$0xff]
        %v446 = vld [vmem:[#allocation6 + $0x30] sm:$0xff]
        %v447 = vld [vmem:[#allocation6 + $0x38] sm:$0xff]
        %v448 = vld [vmem:[#allocation6 + $0x40] sm:$0xff]
        %v449 = vld [vmem:[#allocation6 + $0x48] sm:$0xff]
        %v450 = vld [vmem:[#allocation6 + $0x50] sm:$0xff]
        %v451 = vld [vmem:[#allocation6 + $0x58] sm:$0xff]
        %v452 = vld [vmem:[#allocation6 + $0x60] sm:$0xff]
        %v453 = vld [vmem:[#allocation6 + $0x68] sm:$0xff]
        %v454 = vld [vmem:[#allocation6 + $0x70] sm:$0xff]
        %v455 = vld [vmem:[#allocation6 + $0x78] sm:$0xff]
        %v456 = vld [vmem:[%s2] sm:$0x1]
        %v458 = vlaneseq
        %v459 = vshrl.u32 %v458, 7
        %v460 = vsub.s32 0, %v459
        %v461 = vrot.slane %v456, %v460
        %463 = vmatprep.subr.mxu0 0.0
        %464 = vmatpush1.msra.mxu0 %v455
        %465 = vmatprep.subr.mxu0 0.0
        %466 = vmatpush1.msra.mxu0 %v454
        %467 = vmatprep.subr.mxu0 0.0
        %468 = vmatpush1.msra.mxu0 %v453
        %469 = vmatprep.subr.mxu0 0.0
        %470 = vmatpush1.msra.mxu0 %v452
        %471 = vmatprep.subr.mxu0 0.0
        %472 = vmatpush1.msra.mxu0 %v451
        %473 = vmatprep.subr.mxu0 0.0
        %474 = vmatpush1.msra.mxu0 %v450
        %475 = vmatprep.subr.mxu0 0.0
        %476 = vmatpush1.msra.mxu0 %v449
        %477 = vmatprep.subr.mxu0 0.0
        %478 = vmatpush1.msra.mxu0 %v448
        %479 = vmatprep.subr.mxu0 0.0
        %480 = vmatpush1.msra.mxu0 %v447
        %481 = vmatprep.subr.mxu0 0.0
        %482 = vmatpush1.msra.mxu0 %v446
        %483 = vmatprep.subr.mxu0 0.0
        %484 = vmatpush1.msra.mxu0 %v445
        %485 = vmatprep.subr.mxu0 0.0
        %486 = vmatpush1.msra.mxu0 %v444
        %487 = vmatprep.subr.mxu0 0.0
        %488 = vmatpush1.msra.mxu0 %v443
        %489 = vmatprep.subr.mxu0 0.0
        %490 = vmatpush1.msra.mxu0 %v442
        %491 = vmatprep.subr.mxu0 0.0
        %492 = vmatpush1.msra.mxu0 %v441
        %493 = vmatprep.subr.mxu0 0.0
        %494 = vmatpush1.msra.mxu0 %v440
        %495 = vmatprep.subr.mxu0 0.0
        %496 = vmatpush2.msra.mxu0 0.0
        %497 = vmatprep.subr.mxu0 0.0
        %498 = vmatpush2.msra.mxu0 0.0
        %499 = vmatprep.subr.mxu0 0.0
        %500 = vmatpush2.msra.mxu0 0.0
        %501 = vmatprep.subr.mxu0 0.0
        %502 = vmatpush2.msra.mxu0 0.0
        %503 = vmatprep.subr.mxu0 0.0
        %504 = vmatpush2.msra.mxu0 0.0
        %505 = vmatprep.subr.mxu0 0.0
        %506 = vmatpush2.msra.mxu0 0.0
        %507 = vmatprep.subr.mxu0 0.0
        %508 = vmatpush2.msra.mxu0 0.0
        %509 = vmatprep.subr.mxu0 0.0
        %510 = vmatpush2.msra.mxu0 0.0
        %511 = vmatprep.subr.mxu0 0.0
        %512 = vmatpush2.msra.mxu0 0.0
        %513 = vmatprep.subr.mxu0 0.0
        %514 = vmatpush2.msra.mxu0 0.0
        %515 = vmatprep.subr.mxu0 0.0
        %516 = vmatpush2.msra.mxu0 0.0
        %517 = vmatprep.subr.mxu0 0.0
        %518 = vmatpush2.msra.mxu0 0.0
        %519 = vmatprep.subr.mxu0 0.0
        %520 = vmatpush2.msra.mxu0 0.0
        %521 = vmatprep.subr.mxu0 0.0
        %522 = vmatpush2.msra.mxu0 0.0
        %523 = vmatprep.subr.mxu0 0.0
        %524 = vmatpush2.msra.mxu0 0.0
        %525 = vmatprep.subr.mxu0 0.0
        %526 = vmatpush2.msra.mxu0 0.0
        %527 = vmatprep.mubr.f32.mxu0 0.0
        %528 = vmatmul.mubr.f32.gmra.mxu0 %v408
        %v529 = vpop.f32.mrf.mxu0
        %v530 = vadd.f32 %v461, %v529
        %v531 = vpop.f32.mrf.mxu0
        %532 = vmatprep.mubr.f32.mxu0 0.0
        %533 = vmatmul.mubr.f32.gmra.mxu0 %v409
        %v534 = vpop.f32.mrf.mxu0
        %v535 = vadd.f32 %v461, %v534
        %v536 = vpop.f32.mrf.mxu0
        %537 = vmatprep.mubr.f32.mxu0 0.0
        %538 = vmatmul.mubr.f32.gmra.mxu0 %v410
        %v539 = vpop.f32.mrf.mxu0
        %v540 = vadd.f32 %v461, %v539
        %v541 = vpop.f32.mrf.mxu0
        %542 = vmatprep.mubr.f32.mxu0 0.0
        %543 = vmatmul.mubr.f32.gmra.mxu0 %v411
        %v544 = vpop.f32.mrf.mxu0
        %v545 = vadd.f32 %v461, %v544
        %v546 = vpop.f32.mrf.mxu0
        %547 = vmatprep.mubr.f32.mxu0 0.0
        %548 = vmatmul.mubr.f32.gmra.mxu0 %v412
        %v549 = vpop.f32.mrf.mxu0
        %v550 = vadd.f32 %v461, %v549
        %v551 = vpop.f32.mrf.mxu0
        %552 = vmatprep.mubr.f32.mxu0 0.0
        %553 = vmatmul.mubr.f32.gmra.mxu0 %v413
        %v554 = vpop.f32.mrf.mxu0
        %v555 = vadd.f32 %v461, %v554
        %v556 = vpop.f32.mrf.mxu0
        %557 = vmatprep.mubr.f32.mxu0 0.0
        %558 = vmatmul.mubr.f32.gmra.mxu0 %v414
        %v559 = vpop.f32.mrf.mxu0
        %v560 = vadd.f32 %v461, %v559
        %v561 = vpop.f32.mrf.mxu0
        %562 = vmatprep.mubr.f32.mxu0 0.0
        %563 = vmatmul.mubr.f32.gmra.mxu0 %v415
        %v564 = vpop.f32.mrf.mxu0
        %v565 = vadd.f32 %v461, %v564
        %v566 = vpop.f32.mrf.mxu0
        %567 = vmatprep.mubr.f32.mxu0 0.0
        %568 = vmatmul.mubr.f32.gmra.mxu0 %v416
        %v569 = vpop.f32.mrf.mxu0
        %v570 = vadd.f32 %v461, %v569
        %v571 = vpop.f32.mrf.mxu0
        %572 = vmatprep.mubr.f32.mxu0 0.0
        %573 = vmatmul.mubr.f32.gmra.mxu0 %v417
        %v574 = vpop.f32.mrf.mxu0
        %v575 = vadd.f32 %v461, %v574
        %v576 = vpop.f32.mrf.mxu0
        %577 = vmatprep.mubr.f32.mxu0 0.0
        %578 = vmatmul.mubr.f32.gmra.mxu0 %v418
        %v579 = vpop.f32.mrf.mxu0
        %v580 = vadd.f32 %v461, %v579
        %v581 = vpop.f32.mrf.mxu0
        %582 = vmatprep.mubr.f32.mxu0 0.0
        %583 = vmatmul.mubr.f32.gmra.mxu0 %v419
        %v584 = vpop.f32.mrf.mxu0
        %v585 = vadd.f32 %v461, %v584
        %v586 = vpop.f32.mrf.mxu0
        %587 = vmatprep.mubr.f32.mxu0 0.0
        %588 = vmatmul.mubr.f32.gmra.mxu0 %v420
        %v589 = vpop.f32.mrf.mxu0
        %v590 = vadd.f32 %v461, %v589
        %v591 = vpop.f32.mrf.mxu0
        %592 = vmatprep.mubr.f32.mxu0 0.0
        %593 = vmatmul.mubr.f32.gmra.mxu0 %v421
        %v594 = vpop.f32.mrf.mxu0
        %v595 = vadd.f32 %v461, %v594
        %v596 = vpop.f32.mrf.mxu0
        %597 = vmatprep.mubr.f32.mxu0 0.0
        %598 = vmatmul.mubr.f32.gmra.mxu0 %v422
        %v599 = vpop.f32.mrf.mxu0
        %v600 = vadd.f32 %v461, %v599
        %v601 = vpop.f32.mrf.mxu0
        %602 = vmatprep.mubr.f32.mxu0 0.0
        %603 = vmatmul.mubr.f32.gmra.mxu0 %v423
        %v604 = vpop.f32.mrf.mxu0
        %v605 = vadd.f32 %v461, %v604
        %v606 = vpop.f32.mrf.mxu0
        %607 = vmatprep.mubr.f32.mxu0 0.0
        %608 = vmatmul.mubr.f32.gmra.mxu0 %v424
        %v609 = vpop.f32.mrf.mxu0
        %v610 = vadd.f32 %v461, %v609
        %v611 = vpop.f32.mrf.mxu0
        %612 = vmatprep.mubr.f32.mxu0 0.0
        %613 = vmatmul.mubr.f32.gmra.mxu0 %v425
        %v614 = vpop.f32.mrf.mxu0
        %v615 = vadd.f32 %v461, %v614
        %v616 = vpop.f32.mrf.mxu0
        %617 = vmatprep.mubr.f32.mxu0 0.0
        %618 = vmatmul.mubr.f32.gmra.mxu0 %v426
        %v619 = vpop.f32.mrf.mxu0
        %v620 = vadd.f32 %v461, %v619
        %v621 = vpop.f32.mrf.mxu0
        %622 = vmatprep.mubr.f32.mxu0 0.0
        %623 = vmatmul.mubr.f32.gmra.mxu0 %v427
        %v624 = vpop.f32.mrf.mxu0
        %v625 = vadd.f32 %v461, %v624
        %v626 = vpop.f32.mrf.mxu0
        %627 = vmatprep.mubr.f32.mxu0 0.0
        %628 = vmatmul.mubr.f32.gmra.mxu0 %v428
        %v629 = vpop.f32.mrf.mxu0
        %v630 = vadd.f32 %v461, %v629
        %v631 = vpop.f32.mrf.mxu0
        %632 = vmatprep.mubr.f32.mxu0 0.0
        %633 = vmatmul.mubr.f32.gmra.mxu0 %v429
        %v634 = vpop.f32.mrf.mxu0
        %v635 = vadd.f32 %v461, %v634
        %v636 = vpop.f32.mrf.mxu0
        %637 = vmatprep.mubr.f32.mxu0 0.0
        %638 = vmatmul.mubr.f32.gmra.mxu0 %v430
        %v639 = vpop.f32.mrf.mxu0
        %v640 = vadd.f32 %v461, %v639
        %v641 = vpop.f32.mrf.mxu0
        %642 = vmatprep.mubr.f32.mxu0 0.0
        %643 = vmatmul.mubr.f32.gmra.mxu0 %v431
        %v644 = vpop.f32.mrf.mxu0
        %v645 = vadd.f32 %v461, %v644
        %v646 = vpop.f32.mrf.mxu0
        %647 = vmatprep.mubr.f32.mxu0 0.0
        %648 = vmatmul.mubr.f32.gmra.mxu0 %v432
        %v649 = vpop.f32.mrf.mxu0
        %v650 = vadd.f32 %v461, %v649
        %v651 = vpop.f32.mrf.mxu0
        %652 = vmatprep.mubr.f32.mxu0 0.0
        %653 = vmatmul.mubr.f32.gmra.mxu0 %v433
        %v654 = vpop.f32.mrf.mxu0
        %v655 = vadd.f32 %v461, %v654
        %v656 = vpop.f32.mrf.mxu0
        %657 = vmatprep.mubr.f32.mxu0 0.0
        %658 = vmatmul.mubr.f32.gmra.mxu0 %v434
        %v659 = vpop.f32.mrf.mxu0
        %v660 = vadd.f32 %v461, %v659
        %v661 = vpop.f32.mrf.mxu0
        %662 = vmatprep.mubr.f32.mxu0 0.0
        %663 = vmatmul.mubr.f32.gmra.mxu0 %v435
        %v664 = vpop.f32.mrf.mxu0
        %v665 = vadd.f32 %v461, %v664
        %v666 = vpop.f32.mrf.mxu0
        %667 = vmatprep.mubr.f32.mxu0 0.0
        %668 = vmatmul.mubr.f32.gmra.mxu0 %v436
        %v669 = vpop.f32.mrf.mxu0
        %v670 = vadd.f32 %v461, %v669
        %v671 = vpop.f32.mrf.mxu0
        %672 = vmatprep.mubr.f32.mxu0 0.0
        %673 = vmatmul.mubr.f32.gmra.mxu0 %v437
        %v674 = vpop.f32.mrf.mxu0
        %v675 = vadd.f32 %v461, %v674
        %v676 = vpop.f32.mrf.mxu0
        %677 = vmatprep.mubr.f32.mxu0 0.0
        %678 = vmatmul.mubr.f32.gmra.mxu0 %v438
        %v679 = vpop.f32.mrf.mxu0
        %v680 = vadd.f32 %v461, %v679
        %v681 = vpop.f32.mrf.mxu0
        %682 = vmatprep.mubr.f32.mxu0 0.0
        %683 = vmatmul.mubr.f32.gmra.mxu0 %v439
        %v684 = vpop.f32.mrf.mxu0
        %v685 = vadd.f32 %v461, %v684
        %v686 = vpop.f32.mrf.mxu0
        %687 = vdwg.mxu0
        %v688 = vmax.f32 %v530, 0.0
        %v689 = vmax.f32 %v535, 0.0
        %v690 = vmax.f32 %v540, 0.0
        %v691 = vmax.f32 %v545, 0.0
        %v692 = vmax.f32 %v550, 0.0
        %v693 = vmax.f32 %v555, 0.0
        %v694 = vmax.f32 %v560, 0.0
        %v695 = vmax.f32 %v565, 0.0
        %v696 = vmax.f32 %v570, 0.0
        %v697 = vmax.f32 %v575, 0.0
        %v698 = vmax.f32 %v580, 0.0
        %v699 = vmax.f32 %v585, 0.0
        %v700 = vmax.f32 %v590, 0.0
        %v701 = vmax.f32 %v595, 0.0
        %v702 = vmax.f32 %v600, 0.0
        %v703 = vmax.f32 %v605, 0.0
        %v704 = vmax.f32 %v610, 0.0
        %v705 = vmax.f32 %v615, 0.0
        %v706 = vmax.f32 %v620, 0.0
        %v707 = vmax.f32 %v625, 0.0
        %v708 = vmax.f32 %v630, 0.0
        %v709 = vmax.f32 %v635, 0.0
        %v710 = vmax.f32 %v640, 0.0
        %v711 = vmax.f32 %v645, 0.0
        %v712 = vmax.f32 %v650, 0.0
        %v713 = vmax.f32 %v655, 0.0
        %v714 = vmax.f32 %v660, 0.0
        %v715 = vmax.f32 %v665, 0.0
        %v716 = vmax.f32 %v670, 0.0
        %v717 = vmax.f32 %v675, 0.0
        %v718 = vmax.f32 %v680, 0.0
        %v719 = vmax.f32 %v685, 0.0
        %v720 = vld [vmem:[#allocation2] sm:$0xff]
        %v721 = vld [vmem:[#allocation2 + $0x8] sm:$0xff]
        %v722 = vld [vmem:[#allocation2 + $0x10] sm:$0xff]
        %v723 = vld [vmem:[#allocation2 + $0x18] sm:$0xff]
        %v724 = vld [vmem:[#allocation2 + $0x20] sm:$0xff]
        %v725 = vld [vmem:[#allocation2 + $0x28] sm:$0xff]
        %v726 = vld [vmem:[#allocation2 + $0x30] sm:$0xff]
        %v727 = vld [vmem:[#allocation2 + $0x38] sm:$0xff]
        %v728 = vld [vmem:[#allocation2 + $0x40] sm:$0xff]
        %v729 = vld [vmem:[#allocation2 + $0x48] sm:$0xff]
        %v730 = vld [vmem:[#allocation2 + $0x50] sm:$0xff]
        %v731 = vld [vmem:[#allocation2 + $0x58] sm:$0xff]
        %v732 = vld [vmem:[#allocation2 + $0x60] sm:$0xff]
        %v733 = vld [vmem:[#allocation2 + $0x68] sm:$0xff]
        %v734 = vld [vmem:[#allocation2 + $0x70] sm:$0xff]
        %v735 = vld [vmem:[#allocation2 + $0x78] sm:$0xff]
        %v736 = vld [vmem:[%s327] sm:$0xff]
        %v737 = vld [vmem:[%s327 + $0x8] sm:$0xff]
        %v738 = vld [vmem:[%s327 + $0x10] sm:$0xff]
        %v739 = vld [vmem:[%s327 + $0x18] sm:$0xff]
        %v740 = vld [vmem:[%s327 + $0x20] sm:$0xff]
        %v741 = vld [vmem:[%s327 + $0x28] sm:$0xff]
        %v742 = vld [vmem:[%s327 + $0x30] sm:$0xff]
        %v743 = vld [vmem:[%s327 + $0x38] sm:$0xff]
        %v744 = vld [vmem:[%s327 + $0x40] sm:$0xff]
        %v745 = vld [vmem:[%s327 + $0x48] sm:$0xff]
        %v746 = vld [vmem:[%s327 + $0x50] sm:$0xff]
        %v747 = vld [vmem:[%s327 + $0x58] sm:$0xff]
        %v748 = vld [vmem:[%s327 + $0x60] sm:$0xff]
        %v749 = vld [vmem:[%s327 + $0x68] sm:$0xff]
        %v750 = vld [vmem:[%s327 + $0x70] sm:$0xff]
        %v751 = vld [vmem:[%s327 + $0x78] sm:$0xff]
        %v752 = vpack.c.bf16 %v689, %v688
        %v753 = vpack.c.bf16 %v691, %v690
        %v754 = vpack.c.bf16 %v693, %v692
        %v755 = vpack.c.bf16 %v695, %v694
        %v756 = vpack.c.bf16 %v697, %v696
        %v757 = vpack.c.bf16 %v699, %v698
        %v758 = vpack.c.bf16 %v701, %v700
        %v759 = vpack.c.bf16 %v703, %v702
        %v760 = vpack.c.bf16 %v705, %v704
        %v761 = vpack.c.bf16 %v707, %v706
        %v762 = vpack.c.bf16 %v709, %v708
        %v763 = vpack.c.bf16 %v711, %v710
        %v764 = vpack.c.bf16 %v713, %v712
        %v765 = vpack.c.bf16 %v715, %v714
        %v766 = vpack.c.bf16 %v717, %v716
        %v767 = vpack.c.bf16 %v719, %v718
        %v784 = vunpack.c.l.b16 %v736
        %v785 = vunpack.c.h.b16 %v736
        %v786 = vunpack.c.l.b16 %v737
        %v787 = vunpack.c.h.b16 %v737
        %v788 = vunpack.c.l.b16 %v738
        %v789 = vunpack.c.h.b16 %v738
        %v790 = vunpack.c.l.b16 %v739
        %v791 = vunpack.c.h.b16 %v739
        %v792 = vunpack.c.l.b16 %v740
        %v793 = vunpack.c.h.b16 %v740
        %v794 = vunpack.c.l.b16 %v741
        %v795 = vunpack.c.h.b16 %v741
        %v796 = vunpack.c.l.b16 %v742
        %v797 = vunpack.c.h.b16 %v742
        %v798 = vunpack.c.l.b16 %v743
        %v799 = vunpack.c.h.b16 %v743
        %v800 = vunpack.c.l.b16 %v744
        %v801 = vunpack.c.h.b16 %v744
        %v802 = vunpack.c.l.b16 %v745
        %v803 = vunpack.c.h.b16 %v745
        %v804 = vunpack.c.l.b16 %v746
        %v805 = vunpack.c.h.b16 %v746
        %v806 = vunpack.c.l.b16 %v747
        %v807 = vunpack.c.h.b16 %v747
        %v808 = vunpack.c.l.b16 %v748
        %v809 = vunpack.c.h.b16 %v748
        %v810 = vunpack.c.l.b16 %v749
        %v811 = vunpack.c.h.b16 %v749
        %v812 = vunpack.c.l.b16 %v750
        %v813 = vunpack.c.h.b16 %v750
        %v814 = vunpack.c.l.b16 %v751
        %v815 = vunpack.c.h.b16 %v751
        %v816 = vpack.c.b16 %v786, %v784
        %v817 = vpack.c.b16 %v787, %v785
        %v818 = vpack.c.b16 %v790, %v788
        %v819 = vpack.c.b16 %v791, %v789
        %v820 = vpack.c.b16 %v794, %v792
        %v821 = vpack.c.b16 %v795, %v793
        %v822 = vpack.c.b16 %v798, %v796
        %v823 = vpack.c.b16 %v799, %v797
        %v824 = vpack.c.b16 %v802, %v800
        %v825 = vpack.c.b16 %v803, %v801
        %v826 = vpack.c.b16 %v806, %v804
        %v827 = vpack.c.b16 %v807, %v805
        %v828 = vpack.c.b16 %v810, %v808
        %v829 = vpack.c.b16 %v811, %v809
        %v830 = vpack.c.b16 %v814, %v812
        %v831 = vpack.c.b16 %v815, %v813
        %848 = vmatprep.subr.bf16.mxu0 0
        %849 = vmatpush1.bf16.msra.mxu0 %v759
        %850 = vmatprep.subr.bf16.mxu0 0
        %851 = vmatpush1.bf16.msra.mxu0 %v758
        %852 = vmatprep.subr.bf16.mxu0 0
        %853 = vmatpush1.bf16.msra.mxu0 %v757
        %854 = vmatprep.subr.bf16.mxu0 0
        %855 = vmatpush1.bf16.msra.mxu0 %v756
        %856 = vmatprep.subr.bf16.mxu0 0
        %857 = vmatpush1.bf16.msra.mxu0 %v755
        %858 = vmatprep.subr.bf16.mxu0 0
        %859 = vmatpush1.bf16.msra.mxu0 %v754
        %860 = vmatprep.subr.bf16.mxu0 0
        %861 = vmatpush1.bf16.msra.mxu0 %v753
        %862 = vmatprep.subr.bf16.mxu0 0
        %863 = vmatpush1.bf16.msra.mxu0 %v752
        %864 = vmatprep.subr.bf16.mxu0 0
        %865 = vmatpush2.bf16.msra.mxu0 %v767
        %866 = vmatprep.subr.bf16.mxu0 0
        %867 = vmatpush2.bf16.msra.mxu0 %v766
        %868 = vmatprep.subr.bf16.mxu0 0
        %869 = vmatpush2.bf16.msra.mxu0 %v765
        %870 = vmatprep.subr.bf16.mxu0 0
        %871 = vmatpush2.bf16.msra.mxu0 %v764
        %872 = vmatprep.subr.bf16.mxu0 0
        %873 = vmatpush2.bf16.msra.mxu0 %v763
        %874 = vmatprep.subr.bf16.mxu0 0
        %875 = vmatpush2.bf16.msra.mxu0 %v762
        %876 = vmatprep.subr.bf16.mxu0 0
        %877 = vmatpush2.bf16.msra.mxu0 %v761
        %878 = vmatprep.subr.bf16.mxu0 0
        %879 = vmatpush2.bf16.msra.mxu0 %v760
        %880 = vmatprep.mubr.bf16.mxu0 %v817
        %881 = vmatmul.mubr.bf16.gmra.mxu0 %v816
        %v882 = vpop.f32.mrf.mxu0
        %v883 = vadd.f32 0.0, %v882
        %v884 = vpop.f32.mrf.mxu0
        %v885 = vpop.f32.mrf.mxu0
        %v886 = vadd.f32 0.0, %v885
        %v887 = vpop.f32.mrf.mxu0
        %888 = vmatprep.mubr.bf16.mxu0 %v819
        %889 = vmatmul.mubr.bf16.gmra.mxu0 %v818
        %v890 = vpop.f32.mrf.mxu0
        %v891 = vadd.f32 0.0, %v890
        %v892 = vpop.f32.mrf.mxu0
        %v893 = vpop.f32.mrf.mxu0
        %v894 = vadd.f32 0.0, %v893
        %v895 = vpop.f32.mrf.mxu0
        %896 = vmatprep.mubr.bf16.mxu0 %v821
        %897 = vmatmul.mubr.bf16.gmra.mxu0 %v820
        %v898 = vpop.f32.mrf.mxu0
        %v899 = vadd.f32 0.0, %v898
        %v900 = vpop.f32.mrf.mxu0
        %v901 = vpop.f32.mrf.mxu0
        %v902 = vadd.f32 0.0, %v901
        %v903 = vpop.f32.mrf.mxu0
        %904 = vmatprep.mubr.bf16.mxu0 %v823
        %905 = vmatmul.mubr.bf16.gmra.mxu0 %v822
        %v906 = vpop.f32.mrf.mxu0
        %v907 = vadd.f32 0.0, %v906
        %v908 = vpop.f32.mrf.mxu0
        %v909 = vpop.f32.mrf.mxu0
        %v910 = vadd.f32 0.0, %v909
        %v911 = vpop.f32.mrf.mxu0
        %912 = vmatprep.mubr.bf16.mxu0 %v825
        %913 = vmatmul.mubr.bf16.gmra.mxu0 %v824
        %v914 = vpop.f32.mrf.mxu0
        %v915 = vadd.f32 0.0, %v914
        %v916 = vpop.f32.mrf.mxu0
        %v917 = vpop.f32.mrf.mxu0
        %v918 = vadd.f32 0.0, %v917
        %v919 = vpop.f32.mrf.mxu0
        %920 = vmatprep.mubr.bf16.mxu0 %v827
        %921 = vmatmul.mubr.bf16.gmra.mxu0 %v826
        %v922 = vpop.f32.mrf.mxu0
        %v923 = vadd.f32 0.0, %v922
        %v924 = vpop.f32.mrf.mxu0
        %v925 = vpop.f32.mrf.mxu0
        %v926 = vadd.f32 0.0, %v925
        %v927 = vpop.f32.mrf.mxu0
        %928 = vmatprep.mubr.bf16.mxu0 %v829
        %929 = vmatmul.mubr.bf16.gmra.mxu0 %v828
        %v930 = vpop.f32.mrf.mxu0
        %v931 = vadd.f32 0.0, %v930
        %v932 = vpop.f32.mrf.mxu0
        %v933 = vpop.f32.mrf.mxu0
        %v934 = vadd.f32 0.0, %v933
        %v935 = vpop.f32.mrf.mxu0
        %936 = vmatprep.mubr.bf16.mxu0 %v831
        %937 = vmatmul.mubr.bf16.gmra.mxu0 %v830
        %v938 = vpop.f32.mrf.mxu0
        %v939 = vadd.f32 0.0, %v938
        %v940 = vpop.f32.mrf.mxu0
        %v941 = vpop.f32.mrf.mxu0
        %v942 = vadd.f32 0.0, %v941
        %v943 = vpop.f32.mrf.mxu0
        %944 = vdwg.mxu0
        %v945 = vadd.f32 %v720, %v883
        %v946 = vadd.f32 %v721, %v886
        %v947 = vadd.f32 %v722, %v891
        %v948 = vadd.f32 %v723, %v894
        %v949 = vadd.f32 %v724, %v899
        %v950 = vadd.f32 %v725, %v902
        %v951 = vadd.f32 %v726, %v907
        %v952 = vadd.f32 %v727, %v910
        %v953 = vadd.f32 %v728, %v915
        %v954 = vadd.f32 %v729, %v918
        %v955 = vadd.f32 %v730, %v923
        %v956 = vadd.f32 %v731, %v926
        %v957 = vadd.f32 %v732, %v931
        %v958 = vadd.f32 %v733, %v934
        %v959 = vadd.f32 %v734, %v939
        %v960 = vadd.f32 %v735, %v942
        %961 = vst [vmem:[#allocation2] sm:$0xff] %v945
        %962 = vst [vmem:[#allocation2 + $0x8] sm:$0xff] %v946
        %963 = vst [vmem:[#allocation2 + $0x10] sm:$0xff] %v947
        %964 = vst [vmem:[#allocation2 + $0x18] sm:$0xff] %v948
        %965 = vst [vmem:[#allocation2 + $0x20] sm:$0xff] %v949
        %966 = vst [vmem:[#allocation2 + $0x28] sm:$0xff] %v950
        %967 = vst [vmem:[#allocation2 + $0x30] sm:$0xff] %v951
        %968 = vst [vmem:[#allocation2 + $0x38] sm:$0xff] %v952
        %969 = vst [vmem:[#allocation2 + $0x40] sm:$0xff] %v953
        %970 = vst [vmem:[#allocation2 + $0x48] sm:$0xff] %v954
        %971 = vst [vmem:[#allocation2 + $0x50] sm:$0xff] %v955
        %972 = vst [vmem:[#allocation2 + $0x58] sm:$0xff] %v956
        %973 = vst [vmem:[#allocation2 + $0x60] sm:$0xff] %v957
        %974 = vst [vmem:[#allocation2 + $0x68] sm:$0xff] %v958
        %975 = vst [vmem:[#allocation2 + $0x70] sm:$0xff] %v959
        %976 = vst [vmem:[#allocation2 + $0x78] sm:$0xff] %v960
        %p977 = scmp.eq.s32.totalorder %s29, 1
        // Predicated region
        $region61: #{tpu_custom_call.1} parent=43 // pred_check
          %p978 = pneg %p977
        $region62: #{tpu_custom_call.1} parent=43 // pred_check_branch
          %980 = sbr.rel (%p978) target = $region64
        $region63: #{tpu_custom_call.1} parent=43 // pred_region
          %v981 = vld [vmem:[%s378] sm:$0xff]
          %v982 = vld [vmem:[%s378 + $0x8] sm:$0xff]
          %v983 = vld [vmem:[%s378 + $0x10] sm:$0xff]
          %v984 = vld [vmem:[%s378 + $0x18] sm:$0xff]
          %v985 = vld [vmem:[%s378 + $0x20] sm:$0xff]
          %v986 = vld [vmem:[%s378 + $0x28] sm:$0xff]
          %v987 = vld [vmem:[%s378 + $0x30] sm:$0xff]
          %v988 = vld [vmem:[%s378 + $0x38] sm:$0xff]
          %v989 = vld [vmem:[%s378 + $0x40] sm:$0xff]
          %v990 = vld [vmem:[%s378 + $0x48] sm:$0xff]
          %v991 = vld [vmem:[%s378 + $0x50] sm:$0xff]
          %v992 = vld [vmem:[%s378 + $0x58] sm:$0xff]
          %v993 = vld [vmem:[%s378 + $0x60] sm:$0xff]
          %v994 = vld [vmem:[%s378 + $0x68] sm:$0xff]
          %v995 = vld [vmem:[%s378 + $0x70] sm:$0xff]
          %v996 = vld [vmem:[%s378 + $0x78] sm:$0xff]
          %v997 = vrcp.pop %v981
          %v998 = vrcp.pop %v982
          %v999 = vrcp.pop %v983
          %v1000 = vrcp.pop %v984
          %v1001 = vrcp.pop %v985
          %v1002 = vrcp.pop %v986
          %v1003 = vrcp.pop %v987
          %v1004 = vrcp.pop %v988
          %v1005 = vrcp.pop %v989
          %v1006 = vrcp.pop %v990
          %v1007 = vrcp.pop %v991
          %v1008 = vrcp.pop %v992
          %v1009 = vrcp.pop %v993
          %v1010 = vrcp.pop %v994
          %v1011 = vrcp.pop %v995
          %v1012 = vrcp.pop %v996
          %v1013 = vld [vmem:[#allocation2] sm:$0xff]
          %v1014 = vld [vmem:[#allocation2 + $0x8] sm:$0xff]
          %v1015 = vld [vmem:[#allocation2 + $0x10] sm:$0xff]
          %v1016 = vld [vmem:[#allocation2 + $0x18] sm:$0xff]
          %v1017 = vld [vmem:[#allocation2 + $0x20] sm:$0xff]
          %v1018 = vld [vmem:[#allocation2 + $0x28] sm:$0xff]
          %v1019 = vld [vmem:[#allocation2 + $0x30] sm:$0xff]
          %v1020 = vld [vmem:[#allocation2 + $0x38] sm:$0xff]
          %v1021 = vld [vmem:[#allocation2 + $0x40] sm:$0xff]
          %v1022 = vld [vmem:[#allocation2 + $0x48] sm:$0xff]
          %v1023 = vld [vmem:[#allocation2 + $0x50] sm:$0xff]
          %v1024 = vld [vmem:[#allocation2 + $0x58] sm:$0xff]
          %v1025 = vld [vmem:[#allocation2 + $0x60] sm:$0xff]
          %v1026 = vld [vmem:[#allocation2 + $0x68] sm:$0xff]
          %v1027 = vld [vmem:[#allocation2 + $0x70] sm:$0xff]
          %v1028 = vld [vmem:[#allocation2 + $0x78] sm:$0xff]
          %1030 = vset.pattern.permute.xlu0 0
          %1031 = vperm.xlu0 %1030, %v997
          %v1032 = vpop.permute.xlu0 %1031
          %1035 = vset.pattern.permute.xlu0 0
          %1036 = vperm.xlu0 %1035, %v998
          %v1037 = vpop.permute.xlu0 %1036
          %1040 = vset.pattern.permute.xlu0 0
          %1041 = vperm.xlu0 %1040, %v999
          %v1042 = vpop.permute.xlu0 %1041
          %1045 = vset.pattern.permute.xlu0 0
          %1046 = vperm.xlu0 %1045, %v1000
          %v1047 = vpop.permute.xlu0 %1046
          %1050 = vset.pattern.permute.xlu0 0
          %1051 = vperm.xlu0 %1050, %v1001
          %v1052 = vpop.permute.xlu0 %1051
          %1055 = vset.pattern.permute.xlu0 0
          %1056 = vperm.xlu0 %1055, %v1002
          %v1057 = vpop.permute.xlu0 %1056
          %1060 = vset.pattern.permute.xlu0 0
          %1061 = vperm.xlu0 %1060, %v1003
          %v1062 = vpop.permute.xlu0 %1061
          %1065 = vset.pattern.permute.xlu0 0
          %1066 = vperm.xlu0 %1065, %v1004
          %v1067 = vpop.permute.xlu0 %1066
          %1070 = vset.pattern.permute.xlu0 0
          %1071 = vperm.xlu0 %1070, %v1005
          %v1072 = vpop.permute.xlu0 %1071
          %1075 = vset.pattern.permute.xlu0 0
          %1076 = vperm.xlu0 %1075, %v1006
          %v1077 = vpop.permute.xlu0 %1076
          %1080 = vset.pattern.permute.xlu0 0
          %1081 = vperm.xlu0 %1080, %v1007
          %v1082 = vpop.permute.xlu0 %1081
          %1085 = vset.pattern.permute.xlu0 0
          %1086 = vperm.xlu0 %1085, %v1008
          %v1087 = vpop.permute.xlu0 %1086
          %1090 = vset.pattern.permute.xlu0 0
          %1091 = vperm.xlu0 %1090, %v1009
          %v1092 = vpop.permute.xlu0 %1091
          %1095 = vset.pattern.permute.xlu0 0
          %1096 = vperm.xlu0 %1095, %v1010
          %v1097 = vpop.permute.xlu0 %1096
          %1100 = vset.pattern.permute.xlu0 0
          %1101 = vperm.xlu0 %1100, %v1011
          %v1102 = vpop.permute.xlu0 %1101
          %1105 = vset.pattern.permute.xlu0 0
          %1106 = vperm.xlu0 %1105, %v1012
          %v1107 = vpop.permute.xlu0 %1106
          %v1109 = vmul.f32 %v1013, %v1032
          %v1110 = vmul.f32 %v1014, %v1037
          %v1111 = vmul.f32 %v1015, %v1042
          %v1112 = vmul.f32 %v1016, %v1047
          %v1113 = vmul.f32 %v1017, %v1052
          %v1114 = vmul.f32 %v1018, %v1057
          %v1115 = vmul.f32 %v1019, %v1062
          %v1116 = vmul.f32 %v1020, %v1067
          %v1117 = vmul.f32 %v1021, %v1072
          %v1118 = vmul.f32 %v1022, %v1077
          %v1119 = vmul.f32 %v1023, %v1082
          %v1120 = vmul.f32 %v1024, %v1087
          %v1121 = vmul.f32 %v1025, %v1092
          %v1122 = vmul.f32 %v1026, %v1097
          %v1123 = vmul.f32 %v1027, %v1102
          %v1124 = vmul.f32 %v1028, %v1107
          %v1125 = vld [vmem:[%s384] sm:$0xff]
          %v1126 = vld [vmem:[%s384 + $0x8] sm:$0xff]
          %v1127 = vld [vmem:[%s384 + $0x10] sm:$0xff]
          %v1128 = vld [vmem:[%s384 + $0x18] sm:$0xff]
          %v1129 = vld [vmem:[%s384 + $0x20] sm:$0xff]
          %v1130 = vld [vmem:[%s384 + $0x28] sm:$0xff]
          %v1131 = vld [vmem:[%s384 + $0x30] sm:$0xff]
          %v1132 = vld [vmem:[%s384 + $0x38] sm:$0xff]
          %v1133 = vld [vmem:[%s384 + $0x40] sm:$0xff]
          %v1134 = vld [vmem:[%s384 + $0x48] sm:$0xff]
          %v1135 = vld [vmem:[%s384 + $0x50] sm:$0xff]
          %v1136 = vld [vmem:[%s384 + $0x58] sm:$0xff]
          %v1137 = vld [vmem:[%s384 + $0x60] sm:$0xff]
          %v1138 = vld [vmem:[%s384 + $0x68] sm:$0xff]
          %v1139 = vld [vmem:[%s384 + $0x70] sm:$0xff]
          %v1140 = vld [vmem:[%s384 + $0x78] sm:$0xff]
          %v1141 = vadd.f32 %v1109, %v1125
          %v1142 = vadd.f32 %v1110, %v1126
          %v1143 = vadd.f32 %v1111, %v1127
          %v1144 = vadd.f32 %v1112, %v1128
          %v1145 = vadd.f32 %v1113, %v1129
          %v1146 = vadd.f32 %v1114, %v1130
          %v1147 = vadd.f32 %v1115, %v1131
          %v1148 = vadd.f32 %v1116, %v1132
          %v1149 = vadd.f32 %v1117, %v1133
          %v1150 = vadd.f32 %v1118, %v1134
          %v1151 = vadd.f32 %v1119, %v1135
          %v1152 = vadd.f32 %v1120, %v1136
          %v1153 = vadd.f32 %v1121, %v1137
          %v1154 = vadd.f32 %v1122, %v1138
          %v1155 = vadd.f32 %v1123, %v1139
          %v1156 = vadd.f32 %v1124, %v1140
          %1157 = vst [vmem:[%s370] sm:$0xff] %v1141
          %1158 = vst [vmem:[%s370 + $0x8] sm:$0xff] %v1142
          %1159 = vst [vmem:[%s370 + $0x10] sm:$0xff] %v1143
          %1160 = vst [vmem:[%s370 + $0x18] sm:$0xff] %v1144
          %1161 = vst [vmem:[%s370 + $0x20] sm:$0xff] %v1145
          %1162 = vst [vmem:[%s370 + $0x28] sm:$0xff] %v1146
          %1163 = vst [vmem:[%s370 + $0x30] sm:$0xff] %v1147
          %1164 = vst [vmem:[%s370 + $0x38] sm:$0xff] %v1148
          %1165 = vst [vmem:[%s370 + $0x40] sm:$0xff] %v1149
          %1166 = vst [vmem:[%s370 + $0x48] sm:$0xff] %v1150
          %1167 = vst [vmem:[%s370 + $0x50] sm:$0xff] %v1151
          %1168 = vst [vmem:[%s370 + $0x58] sm:$0xff] %v1152
          %1169 = vst [vmem:[%s370 + $0x60] sm:$0xff] %v1153
          %1170 = vst [vmem:[%s370 + $0x68] sm:$0xff] %v1154
          %1171 = vst [vmem:[%s370 + $0x70] sm:$0xff] %v1155
          %1172 = vst [vmem:[%s370 + $0x78] sm:$0xff] %v1156
        $region64: #{tpu_custom_call.1} parent=43 // pred_fallthru
          _
        %s1173 = sand.u32 %s192, 1
        %s1174 = scalar_lea.sflag [#allocation5], %s1173
        %s1175 = sand.u32 %s192, 1
        %s1176 = smul.addr %s1175, 128
        %s1177 = scalar_lea.vmem [#allocation9], %s1176
        // Predicated region
        $region65: #{tpu_custom_call.1} parent=43 // pred_check
          %p1178 = pneg %p202
        $region66: #{tpu_custom_call.1} parent=43 // pred_check_branch
          %1180 = sbr.rel (%p1178) target = $region68
        $region67: #{tpu_custom_call.1} parent=43 // pred_region
          %s1181 = smul.u32 16, %s28
          %s1183 = ssub.s32 2048, 2048
          %1184 = vsyncadd %s1174, %s1183
          %s1185 = smul.addr %s1181, 128
          %s1186 = scalar_lea.hbm %s6, %s1185
          %s1187 = sshll.u32 %s1177, 4
          %s1188 = int_to_ptr.vmem [resolvable:$true] %s1187
          %1193 = dma.vmem_to_hbm [thread:$0]  %s1188, 2048, %s1186, %s1174, 128, 128, 8
        $region68: #{tpu_custom_call.1} parent=43 // pred_fallthru
          _
      $region44: #{tpu_custom_call.1} parent=5 // pred_fallthru
        _
      %p1194 = scmp.le.s32.totalorder 2, %s19
      // Predicated region
      $region69: #{tpu_custom_call.1} parent=5 // pred_check
        %p1195 = pneg %p1194
      $region70: #{tpu_custom_call.1} parent=5 // pred_check_branch
        %1197 = sbr.rel (%p1195) target = $region72
      $region71: #{tpu_custom_call.1} parent=5 // pred_region
        %s1198 = ssub.s32 %s19, 2
        // Predicated region
        $region73: #{tpu_custom_call.1} parent=71 // pred_check
          %p1199 = pneg %p208
        $region74: #{tpu_custom_call.1} parent=71 // pred_check_branch
          %1201 = sbr.rel (%p1199) target = $region76
        $region75: #{tpu_custom_call.1} parent=71 // pred_region
          %s1202 = sand.u32 %s193, 1
          %s1203 = scalar_lea.sflag [#allocation5], %s1202
          %s1204 = sand.u32 %s193, 1
          %s1205 = smul.addr %s1204, 128
          %s1206 = scalar_lea.vmem [#allocation9], %s1205
          %1207 = dma.done %s1203, 2048
        $region76: #{tpu_custom_call.1} parent=71 // pred_fallthru
          _
      $region72: #{tpu_custom_call.1} parent=5 // pred_fallthru
        _
    $region6: #{tpu_custom_call.1} parent=1 // loop_footer
      %s23 = sadd.s32 1, %s19
    $region7: #{tpu_custom_call.1} parent=1 // loop_footer_branch
      %18 = sbr.rel target = $region3
    $region8: #{tpu_custom_call.1} parent=1 // loop_exit
      _
    %1208 = vsyncpa [#allocation4], 1
    %s1209 = scalar_lea.sflag [#allocation4], 1
    %1210 = vsyncpa %s1209, 1
    %1211 = vsyncpa [#allocation7], 1
    %1212 = vsyncpa [#allocation5], 1
    %s1213 = scalar_lea.sflag [#allocation5], 1
    %1214 = vsyncpa %s1213, 1

</llo_original>
